<compile_context>
chip_gen: v6e
topology: v6e:2x2x1
jax: 0.10.0
libtpu: 0.0.40
codegen_flags: <defaults>
</compile_context>

<pallas_src>
import jax
import jax.numpy as jnp
import numpy as np
from jax.experimental import pallas as pl
from jax.experimental.pallas import tpu as pltpu


_MAX_BATCH_TILE = 2048  # rows per grid step when batch is large (lane-axis tile)


def _encoder_kernel(x_ref, wc_ref, w1_ref, b1_ref, w2_ref, b2_ref,
                    w3_ref, b3_ref, w4_ref, b4_ref, o_ref):
    """Fused Encoder forward for one batch tile.

    x_ref : (TB, nx)       input tile (natural layout)
    wc_ref: (M, nx)        one-hot control-selection matrix
    wK_ref: (out_k, in_k)  layer-k weight, stored transposed (out, in)
    bK_ref: (out_k, 1)     layer-k bias (column vector, broadcasts over lanes)
    o_ref : (P, TB)        output tile, transposed (batch on lanes)
    """
    # Transpose once so batch sits on the 128-lane axis for every matmul
    # (XLU work, essentially free filler next to the MXU).
    xt = x_ref[...].T                                               # (nx, TB)

    # Control copy: one-hot selection matmul (exact: 1.0*x + 0.0 terms).
    y_ctrl = jnp.dot(wc_ref[...], xt,
                     preferred_element_type=jnp.float32)            # (M, TB)

    # 4-layer MLP on the non-control entries; the non-control gather is folded
    # into w1 (zero rows at control positions), so we contract over all nx.
    h = jnp.dot(w1_ref[...], xt,
                preferred_element_type=jnp.float32) + b1_ref[...]
    h = jnp.maximum(h, 0.0)
    h = jnp.dot(w2_ref[...], h,
                preferred_element_type=jnp.float32) + b2_ref[...]
    h = jnp.maximum(h, 0.0)
    h = jnp.dot(w3_ref[...], h,
                preferred_element_type=jnp.float32) + b3_ref[...]
    h = jnp.maximum(h, 0.0)
    y_mlp = jnp.dot(w4_ref[...], h,
                    preferred_element_type=jnp.float32) + b4_ref[...]  # (P-M, TB)

    o_ref[...] = jnp.concatenate([y_ctrl, y_mlp], axis=0).astype(o_ref.dtype)


def _const_spec(a):
    """Full-array block that stays VMEM-resident (constant index_map)."""
    ndim = a.ndim
    return pl.BlockSpec(a.shape, lambda i: (0,) * ndim)


def encoder_forward(x, kernel_params):
    """x: (batch, nx) float32 -> (batch, P) float32."""
    wc, w1t, b1, w2t, b2, w3t, b3, w4t, b4 = kernel_params
    batch, nx = x.shape
    M = wc.shape[0]
    P = M + w4t.shape[0]

    # Batch tile: full batch if it fits a single step, else a lane-dense tile
    # (lane-axis blocks must be a multiple of 128 or the full extent; 2048 is).
    tb = batch if batch <= _MAX_BATCH_TILE else _MAX_BATCH_TILE
    grid = (pl.cdiv(batch, tb),)

    weights = (wc, w1t, b1, w2t, b2, w3t, b3, w4t, b4)
    yt = pl.pallas_call(
        _encoder_kernel,
        out_shape=jax.ShapeDtypeStruct((P, batch), jnp.float32),
        grid=grid,
        in_specs=[pl.BlockSpec((tb, nx), lambda i: (i, 0))]
                 + [_const_spec(a) for a in weights],
        out_specs=pl.BlockSpec((P, tb), lambda i: (0, i)),
        compiler_params=pltpu.CompilerParams(
            dimension_semantics=("parallel",)),
    )(x, *weights)

    # Layout plumbing only: kernel emits (P, batch) so its stores are
    # lane-dense; transpose the tiny result back to (batch, P).
    return yt.T


class EncoderPallas:
    """JAX/Pallas port of the PyTorch Encoder module."""

    def __init__(self, nx, M, hidden_dim, P, control_positions, key):
        self.nx = nx
        self.M = M
        self.P = P
        self.hidden_dim = hidden_dim
        self.control_positions = np.asarray(control_positions, dtype=np.int64)

        mask = np.ones(nx, dtype=bool)
        mask[self.control_positions] = False
        self.non_control_positions = np.nonzero(mask)[0]

        # nn.Linear-style init; weights kept as (in, out) so the reference
        # forward is x @ W + b.
        dims = [nx - M, hidden_dim, hidden_dim, hidden_dim, P - M]
        keys = jax.random.split(key, len(dims) - 1)
        raw = []
        for i, (din, dout) in enumerate(zip(dims[:-1], dims[1:])):
            bound = 1.0 / np.sqrt(din)
            kw, kb = jax.random.split(keys[i])
            w = jax.random.uniform(kw, (din, dout), jnp.float32, -bound, bound)
            b = jax.random.uniform(kb, (dout,), jnp.float32, -bound, bound)
            raw.append((w, b))
        self.raw_params = raw

        # --- Precompute kernel-side parameters --------------------------------
        # Fold the static non-control gather into layer 1: rows of w1 scattered
        # to their original nx positions, zeros at the control positions.
        w1, b1 = raw[0]
        w1_eff = jnp.zeros((nx, hidden_dim), jnp.float32)
        w1_eff = w1_eff.at[self.non_control_positions, :].set(w1)
        # One-hot control-selection matrix (M, nx) for the y[:, :M] copy.
        wc = jnp.zeros((M, nx), jnp.float32)
        wc = wc.at[np.arange(M), self.control_positions].set(1.0)
        # Kernel computes in (features, batch) orientation -> store weights
        # transposed (out, in) and biases as (out, 1) columns.
        (w2, b2), (w3, b3), (w4, b4) = raw[1], raw[2], raw[3]
        self.kernel_params = (
            wc,
            w1_eff.T, b1.reshape(-1, 1),
            w2.T, b2.reshape(-1, 1),
            w3.T, b3.reshape(-1, 1),
            w4.T, b4.reshape(-1, 1),
        )

    def __call__(self, x):
        return encoder_forward(x, self.kernel_params)

    # Pure-JAX reference (gather -> MLP -> concat) for correctness check.
    def reference(self, x):
        y_control = x[:, self.control_positions]
        h = x[:, self.non_control_positions]
        for i, (w, b) in enumerate(self.raw_params):
            h = h @ w + b
            if i < len(self.raw_params) - 1:
                h = jnp.maximum(h, 0.0)
        return jnp.concatenate([y_control, h], axis=1)


if __name__ == "__main__":
    # nx = 16 spatial points, M = 4 controlled, hidden_dim = 32, P = 12 latent
    # -> MLP maps (nx - M)=12 -> 32 -> 32 -> 32 -> (P - M)=8
    nx, M, hidden_dim, P = 16, 4, 32, 12
    control_positions = [0, 5, 10, 15]
    batch = 8

    key = jax.random.PRNGKey(0)
    k_param, k_x = jax.random.split(key)

    enc = EncoderPallas(nx, M, hidden_dim, P, control_positions, k_param)
    x = jax.random.normal(k_x, (batch, nx), dtype=jnp.float32)

    y = jax.block_until_ready(enc(x))
    y_ref = jax.block_until_ready(enc.reference(x))

    assert y.shape == (batch, P), y.shape
    np.testing.assert_allclose(np.asarray(y), np.asarray(y_ref),
                               rtol=1e-5, atol=1e-5)

    print("KERNEL_OK")
</pallas_src>

<mosaic_0001>
module attributes {stable_mosaic.version = 11 : i64} {
  func.func @_encoder_kernel(%arg0: i32, %arg1: memref<8x16xf32, #tpu.memory_space<vmem>>, %arg2: memref<4x16xf32, #tpu.memory_space<vmem>>, %arg3: memref<32x16xf32, #tpu.memory_space<vmem>>, %arg4: memref<32x1xf32, #tpu.memory_space<vmem>>, %arg5: memref<32x32xf32, #tpu.memory_space<vmem>>, %arg6: memref<32x1xf32, #tpu.memory_space<vmem>>, %arg7: memref<32x32xf32, #tpu.memory_space<vmem>>, %arg8: memref<32x1xf32, #tpu.memory_space<vmem>>, %arg9: memref<8x32xf32, #tpu.memory_space<vmem>>, %arg10: memref<8x1xf32, #tpu.memory_space<vmem>>, %arg11: memref<12x8xf32, #tpu.memory_space<vmem>>) attributes {dimension_semantics = [#tpu.dimension_semantics<parallel>], iteration_bounds = array<i64: 1>, scalar_prefetch = 0 : i64, scratch_operands = 0 : i64, tpu.core_type = #tpu.core_type<tc>, window_params = [{transform_indices = @transform_0, window_bounds = array<i64: 8, 16>}, {pipeline_mode = #tpu.pipeline_mode<synchronous>, transform_indices = @transform_1, window_bounds = array<i64: 4, 16>}, {pipeline_mode = #tpu.pipeline_mode<synchronous>, transform_indices = @transform_2, window_bounds = array<i64: 32, 16>}, {pipeline_mode = #tpu.pipeline_mode<synchronous>, transform_indices = @transform_3, window_bounds = array<i64: 32, 1>}, {pipeline_mode = #tpu.pipeline_mode<synchronous>, transform_indices = @transform_4, window_bounds = array<i64: 32, 32>}, {pipeline_mode = #tpu.pipeline_mode<synchronous>, transform_indices = @transform_5, window_bounds = array<i64: 32, 1>}, {pipeline_mode = #tpu.pipeline_mode<synchronous>, transform_indices = @transform_6, window_bounds = array<i64: 32, 32>}, {pipeline_mode = #tpu.pipeline_mode<synchronous>, transform_indices = @transform_7, window_bounds = array<i64: 32, 1>}, {pipeline_mode = #tpu.pipeline_mode<synchronous>, transform_indices = @transform_8, window_bounds = array<i64: 8, 32>}, {pipeline_mode = #tpu.pipeline_mode<synchronous>, transform_indices = @transform_9, window_bounds = array<i64: 8, 1>}, {transform_indices = @transform_10, window_bounds = array<i64: 12, 8>}]} {
    %c0 = arith.constant 0 : index
    %c0_0 = arith.constant 0 : index
    %0 = vector.load %arg1[%c0, %c0_0] : memref<8x16xf32, #tpu.memory_space<vmem>>, vector<8x16xf32>
    %1 = tpu.transpose %0, [1, 0] : vector<8x16xf32> -> vector<16x8xf32>
    %c0_1 = arith.constant 0 : index
    %c0_2 = arith.constant 0 : index
    %2 = vector.load %arg2[%c0_1, %c0_2] : memref<4x16xf32, #tpu.memory_space<vmem>>, vector<4x16xf32>
    %cst = arith.constant dense<0.000000e+00> : vector<4x8xf32>
    %3 = tpu.matmul %2, %1, %cst {dimension_numbers = #tpu.dot_dimension_numbers<[1], [0], [0], [1], [0, 0, 1, 1], [], []>} : vector<4x16xf32>, vector<16x8xf32>, vector<4x8xf32> -> vector<4x8xf32>
    %c0_3 = arith.constant 0 : index
    %c0_4 = arith.constant 0 : index
    %4 = vector.load %arg3[%c0_3, %c0_4] : memref<32x16xf32, #tpu.memory_space<vmem>>, vector<32x16xf32>
    %cst_5 = arith.constant dense<0.000000e+00> : vector<32x8xf32>
    %5 = tpu.matmul %4, %1, %cst_5 {dimension_numbers = #tpu.dot_dimension_numbers<[1], [0], [0], [1], [0, 0, 1, 1], [], []>} : vector<32x16xf32>, vector<16x8xf32>, vector<32x8xf32> -> vector<32x8xf32>
    %c0_6 = arith.constant 0 : index
    %c0_7 = arith.constant 0 : index
    %6 = vector.load %arg4[%c0_6, %c0_7] : memref<32x1xf32, #tpu.memory_space<vmem>>, vector<32x1xf32>
    %7 = vector.broadcast %6 : vector<32x1xf32> to vector<32x8xf32>
    %8 = arith.addf %5, %7 : vector<32x8xf32>
    %cst_8 = arith.constant 0.000000e+00 : f32
    %9 = vector.broadcast %cst_8 : f32 to vector<32x8xf32>
    %10 = arith.maximumf %8, %9 : vector<32x8xf32>
    %c0_9 = arith.constant 0 : index
    %c0_10 = arith.constant 0 : index
    %11 = vector.load %arg5[%c0_9, %c0_10] : memref<32x32xf32, #tpu.memory_space<vmem>>, vector<32x32xf32>
    %cst_11 = arith.constant dense<0.000000e+00> : vector<32x8xf32>
    %12 = tpu.matmul %11, %10, %cst_11 {dimension_numbers = #tpu.dot_dimension_numbers<[1], [0], [0], [1], [0, 0, 1, 1], [], []>} : vector<32x32xf32>, vector<32x8xf32>, vector<32x8xf32> -> vector<32x8xf32>
    %c0_12 = arith.constant 0 : index
    %c0_13 = arith.constant 0 : index
    %13 = vector.load %arg6[%c0_12, %c0_13] : memref<32x1xf32, #tpu.memory_space<vmem>>, vector<32x1xf32>
    %14 = vector.broadcast %13 : vector<32x1xf32> to vector<32x8xf32>
    %15 = arith.addf %12, %14 : vector<32x8xf32>
    %cst_14 = arith.constant 0.000000e+00 : f32
    %16 = vector.broadcast %cst_14 : f32 to vector<32x8xf32>
    %17 = arith.maximumf %15, %16 : vector<32x8xf32>
    %c0_15 = arith.constant 0 : index
    %c0_16 = arith.constant 0 : index
    %18 = vector.load %arg7[%c0_15, %c0_16] : memref<32x32xf32, #tpu.memory_space<vmem>>, vector<32x32xf32>
    %cst_17 = arith.constant dense<0.000000e+00> : vector<32x8xf32>
    %19 = tpu.matmul %18, %17, %cst_17 {dimension_numbers = #tpu.dot_dimension_numbers<[1], [0], [0], [1], [0, 0, 1, 1], [], []>} : vector<32x32xf32>, vector<32x8xf32>, vector<32x8xf32> -> vector<32x8xf32>
    %c0_18 = arith.constant 0 : index
    %c0_19 = arith.constant 0 : index
    %20 = vector.load %arg8[%c0_18, %c0_19] : memref<32x1xf32, #tpu.memory_space<vmem>>, vector<32x1xf32>
    %21 = vector.broadcast %20 : vector<32x1xf32> to vector<32x8xf32>
    %22 = arith.addf %19, %21 : vector<32x8xf32>
    %cst_20 = arith.constant 0.000000e+00 : f32
    %23 = vector.broadcast %cst_20 : f32 to vector<32x8xf32>
    %24 = arith.maximumf %22, %23 : vector<32x8xf32>
    %c0_21 = arith.constant 0 : index
    %c0_22 = arith.constant 0 : index
    %25 = vector.load %arg9[%c0_21, %c0_22] : memref<8x32xf32, #tpu.memory_space<vmem>>, vector<8x32xf32>
    %cst_23 = arith.constant dense<0.000000e+00> : vector<8x8xf32>
    %26 = tpu.matmul %25, %24, %cst_23 {dimension_numbers = #tpu.dot_dimension_numbers<[1], [0], [0], [1], [0, 0, 1, 1], [], []>} : vector<8x32xf32>, vector<32x8xf32>, vector<8x8xf32> -> vector<8x8xf32>
    %c0_24 = arith.constant 0 : index
    %c0_25 = arith.constant 0 : index
    %27 = vector.load %arg10[%c0_24, %c0_25] : memref<8x1xf32, #tpu.memory_space<vmem>>, vector<8x1xf32>
    %28 = vector.broadcast %27 : vector<8x1xf32> to vector<8x8xf32>
    %29 = arith.addf %26, %28 : vector<8x8xf32>
    %30 = tpu.concatenate %3, %29 in 0 : vector<4x8xf32>, vector<8x8xf32> -> vector<12x8xf32>
    %c0_26 = arith.constant 0 : index
    %c0_27 = arith.constant 0 : index
    %31 = vector.load %arg11[%c0_26, %c0_27] : memref<12x8xf32, #tpu.memory_space<vmem>>, vector<12x8xf32>
    tpu.vector_store %arg11[%c0_26, %c0_27], %30 {strides = array<i32>} : memref<12x8xf32, #tpu.memory_space<vmem>>, vector<12x8xf32>,
    return
  }
  func.func @transform_0(%arg0: i32) -> (i32, i32) {
    %c0_i32 = arith.constant 0 : i32
    %c0_i32_0 = arith.constant 0 : i32
    return %arg0, %c0_i32 : i32, i32
  }
  func.func @transform_1(%arg0: i32) -> (i32, i32) {
    %c0_i32 = arith.constant 0 : i32
    %c0_i32_0 = arith.constant 0 : i32
    %c0_i32_1 = arith.constant 0 : i32
    return %c0_i32, %c0_i32_0 : i32, i32
  }
  func.func @transform_2(%arg0: i32) -> (i32, i32) {
    %c0_i32 = arith.constant 0 : i32
    %c0_i32_0 = arith.constant 0 : i32
    %c0_i32_1 = arith.constant 0 : i32
    return %c0_i32, %c0_i32_0 : i32, i32
  }
  func.func @transform_3(%arg0: i32) -> (i32, i32) {
    %c0_i32 = arith.constant 0 : i32
    %c0_i32_0 = arith.constant 0 : i32
    %c0_i32_1 = arith.constant 0 : i32
    return %c0_i32, %c0_i32_0 : i32, i32
  }
  func.func @transform_4(%arg0: i32) -> (i32, i32) {
    %c0_i32 = arith.constant 0 : i32
    %c0_i32_0 = arith.constant 0 : i32
    %c0_i32_1 = arith.constant 0 : i32
    return %c0_i32, %c0_i32_0 : i32, i32
  }
  func.func @transform_5(%arg0: i32) -> (i32, i32) {
    %c0_i32 = arith.constant 0 : i32
    %c0_i32_0 = arith.constant 0 : i32
    %c0_i32_1 = arith.constant 0 : i32
    return %c0_i32, %c0_i32_0 : i32, i32
  }
  func.func @transform_6(%arg0: i32) -> (i32, i32) {
    %c0_i32 = arith.constant 0 : i32
    %c0_i32_0 = arith.constant 0 : i32
    %c0_i32_1 = arith.constant 0 : i32
    return %c0_i32, %c0_i32_0 : i32, i32
  }
  func.func @transform_7(%arg0: i32) -> (i32, i32) {
    %c0_i32 = arith.constant 0 : i32
    %c0_i32_0 = arith.constant 0 : i32
    %c0_i32_1 = arith.constant 0 : i32
    return %c0_i32, %c0_i32_0 : i32, i32
  }
  func.func @transform_8(%arg0: i32) -> (i32, i32) {
    %c0_i32 = arith.constant 0 : i32
    %c0_i32_0 = arith.constant 0 : i32
    %c0_i32_1 = arith.constant 0 : i32
    return %c0_i32, %c0_i32_0 : i32, i32
  }
  func.func @transform_9(%arg0: i32) -> (i32, i32) {
    %c0_i32 = arith.constant 0 : i32
    %c0_i32_0 = arith.constant 0 : i32
    %c0_i32_1 = arith.constant 0 : i32
    return %c0_i32, %c0_i32_0 : i32, i32
  }
  func.func @transform_10(%arg0: i32) -> (i32, i32) {
    %c0_i32 = arith.constant 0 : i32
    %c0_i32_0 = arith.constant 0 : i32
    return %c0_i32, %arg0 : i32, i32
  }
}

</mosaic_0001>

<llo_original>
// kernel: tpu_custom_call.1
$region0: #{tpu_custom_call.1}
  #allocation0 [shape = 'u32[]', space=smem, size = 0x4, offset = 0x4, fixed_abs, tag = 'smem constant byte address 0x4 - core index']
  #allocation1 [shape = 'u32[144,128]{1,0:T(1,128)}', space=vmem, size = 0x12000, scoped, tag = 'internal scratch']
  %s0 = inlined_call_operand.vmem [shape: f32[8,16], index: 0, kind: input, shape index: {}]
  %s1 = inlined_call_operand.vmem [shape: f32[4,16], index: 1, kind: input, shape index: {}]
  %s2 = inlined_call_operand.vmem [shape: f32[32,16], index: 2, kind: input, shape index: {}]
  %s3 = inlined_call_operand.vmem [shape: f32[32,1], index: 3, kind: input, shape index: {}]
  %s4 = inlined_call_operand.vmem [shape: f32[32,32], index: 4, kind: input, shape index: {}]
  %s5 = inlined_call_operand.vmem [shape: f32[32,1], index: 5, kind: input, shape index: {}]
  %s6 = inlined_call_operand.vmem [shape: f32[32,32], index: 6, kind: input, shape index: {}]
  %s7 = inlined_call_operand.vmem [shape: f32[32,1], index: 7, kind: input, shape index: {}]
  %s8 = inlined_call_operand.vmem [shape: f32[8,32], index: 8, kind: input, shape index: {}]
  %s9 = inlined_call_operand.vmem [shape: f32[8,1], index: 9, kind: input, shape index: {}]
  %s10 = inlined_call_operand.vmem [shape: f32[12,8], index: 10, kind: output, shape index: {}]
  %s11 = sld [smem:[#allocation0]]
  $region50: #{tpu_custom_call.1} parent=0
    _
  %s13 = ssub.s32 1, %s11
  %s14 = scalar_select 0, %s13, %s11
  // Predicated region
  $region2: #{tpu_custom_call.1} parent=0 // pred_check
    _
  $region3: #{tpu_custom_call.1} parent=0 // pred_check_branch
    %16 = sbr.rel (0) target = $region5
  $region4: #{tpu_custom_call.1} parent=0 // pred_region
    _
  $region5: #{tpu_custom_call.1} parent=0 // pred_fallthru
    _
  // Predicated region
  $region6: #{tpu_custom_call.1} parent=0 // pred_check
    _
  $region7: #{tpu_custom_call.1} parent=0 // pred_check_branch
    %18 = sbr.rel (0) target = $region9
  $region8: #{tpu_custom_call.1} parent=0 // pred_region
    _
  $region9: #{tpu_custom_call.1} parent=0 // pred_fallthru
    _
  // Predicated region
  $region10: #{tpu_custom_call.1} parent=0 // pred_check
    _
  $region11: #{tpu_custom_call.1} parent=0 // pred_check_branch
    %20 = sbr.rel (0) target = $region13
  $region12: #{tpu_custom_call.1} parent=0 // pred_region
    _
  $region13: #{tpu_custom_call.1} parent=0 // pred_fallthru
    _
  // Predicated region
  $region14: #{tpu_custom_call.1} parent=0 // pred_check
    _
  $region15: #{tpu_custom_call.1} parent=0 // pred_check_branch
    %22 = sbr.rel (0) target = $region17
  $region16: #{tpu_custom_call.1} parent=0 // pred_region
    _
  $region17: #{tpu_custom_call.1} parent=0 // pred_fallthru
    _
  // Predicated region
  $region18: #{tpu_custom_call.1} parent=0 // pred_check
    _
  $region19: #{tpu_custom_call.1} parent=0 // pred_check_branch
    %24 = sbr.rel (0) target = $region21
  $region20: #{tpu_custom_call.1} parent=0 // pred_region
    _
  $region21: #{tpu_custom_call.1} parent=0 // pred_fallthru
    _
  // Predicated region
  $region22: #{tpu_custom_call.1} parent=0 // pred_check
    _
  $region23: #{tpu_custom_call.1} parent=0 // pred_check_branch
    %26 = sbr.rel (0) target = $region25
  $region24: #{tpu_custom_call.1} parent=0 // pred_region
    _
  $region25: #{tpu_custom_call.1} parent=0 // pred_fallthru
    _
  // Predicated region
  $region26: #{tpu_custom_call.1} parent=0 // pred_check
    _
  $region27: #{tpu_custom_call.1} parent=0 // pred_check_branch
    %28 = sbr.rel (0) target = $region29
  $region28: #{tpu_custom_call.1} parent=0 // pred_region
    _
  $region29: #{tpu_custom_call.1} parent=0 // pred_fallthru
    _
  // Predicated region
  $region30: #{tpu_custom_call.1} parent=0 // pred_check
    _
  $region31: #{tpu_custom_call.1} parent=0 // pred_check_branch
    %30 = sbr.rel (0) target = $region33
  $region32: #{tpu_custom_call.1} parent=0 // pred_region
    _
  $region33: #{tpu_custom_call.1} parent=0 // pred_fallthru
    _
  // Predicated region
  $region34: #{tpu_custom_call.1} parent=0 // pred_check
    _
  $region35: #{tpu_custom_call.1} parent=0 // pred_check_branch
    %32 = sbr.rel (0) target = $region37
  $region36: #{tpu_custom_call.1} parent=0 // pred_region
    _
  $region37: #{tpu_custom_call.1} parent=0 // pred_fallthru
    _
  // Predicated region
  $region38: #{tpu_custom_call.1} parent=0 // pred_check
    _
  $region39: #{tpu_custom_call.1} parent=0 // pred_check_branch
    %34 = sbr.rel (0) target = $region41
  $region40: #{tpu_custom_call.1} parent=0 // pred_region
    _
  $region41: #{tpu_custom_call.1} parent=0 // pred_fallthru
    _
  %v35 = vld [vmem:[%s0] sm:$0xff]
  %v36 = vld [vmem:[%s1] sm:$0xf]
  %vm37 = vcmask 130048
  %v39 = vsel %vm37, %v36, 0
  %v42 = vsel %vm37, %v35, 0
  %44 = vmatprep.subr.mxu0 0.0
  %45 = vmatpush1.xpose.msra.mxu0 0.0
  %46 = vmatprep.subr.mxu0 0.0
  %47 = vmatpush1.xpose.msra.mxu0 0.0
  %48 = vmatprep.subr.mxu0 0.0
  %49 = vmatpush1.xpose.msra.mxu0 0.0
  %50 = vmatprep.subr.mxu0 0.0
  %51 = vmatpush1.xpose.msra.mxu0 0.0
  %52 = vmatprep.subr.mxu0 0.0
  %53 = vmatpush1.xpose.msra.mxu0 0.0
  %54 = vmatprep.subr.mxu0 0.0
  %55 = vmatpush1.xpose.msra.mxu0 0.0
  %56 = vmatprep.subr.mxu0 0.0
  %57 = vmatpush1.xpose.msra.mxu0 0.0
  %58 = vmatprep.subr.mxu0 0.0
  %59 = vmatpush1.xpose.msra.mxu0 0.0
  %60 = vmatprep.subr.mxu0 0.0
  %61 = vmatpush1.xpose.msra.mxu0 0.0
  %62 = vmatprep.subr.mxu0 0.0
  %63 = vmatpush1.xpose.msra.mxu0 0.0
  %64 = vmatprep.subr.mxu0 0.0
  %65 = vmatpush1.xpose.msra.mxu0 0.0
  %66 = vmatprep.subr.mxu0 0.0
  %67 = vmatpush1.xpose.msra.mxu0 0.0
  %68 = vmatprep.subr.mxu0 0.0
  %69 = vmatpush1.xpose.msra.mxu0 0.0
  %70 = vmatprep.subr.mxu0 0.0
  %71 = vmatpush1.xpose.msra.mxu0 0.0
  %72 = vmatprep.subr.mxu0 0.0
  %73 = vmatpush1.xpose.msra.mxu0 0.0
  %74 = vmatprep.subr.mxu0 0.0
  %75 = vmatpush1.xpose.msra.mxu0 %v42
  %76 = vmatprep.subr.mxu0 0.0
  %77 = vmatpush2.xpose.msra.mxu0 0.0
  %78 = vmatprep.subr.mxu0 0.0
  %79 = vmatpush2.xpose.msra.mxu0 0.0
  %80 = vmatprep.subr.mxu0 0.0
  %81 = vmatpush2.xpose.msra.mxu0 0.0
  %82 = vmatprep.subr.mxu0 0.0
  %83 = vmatpush2.xpose.msra.mxu0 0.0
  %84 = vmatprep.subr.mxu0 0.0
  %85 = vmatpush2.xpose.msra.mxu0 0.0
  %86 = vmatprep.subr.mxu0 0.0
  %87 = vmatpush2.xpose.msra.mxu0 0.0
  %88 = vmatprep.subr.mxu0 0.0
  %89 = vmatpush2.xpose.msra.mxu0 0.0
  %90 = vmatprep.subr.mxu0 0.0
  %91 = vmatpush2.xpose.msra.mxu0 0.0
  %92 = vmatprep.subr.mxu0 0.0
  %93 = vmatpush2.xpose.msra.mxu0 0.0
  %94 = vmatprep.subr.mxu0 0.0
  %95 = vmatpush2.xpose.msra.mxu0 0.0
  %96 = vmatprep.subr.mxu0 0.0
  %97 = vmatpush2.xpose.msra.mxu0 0.0
  %98 = vmatprep.subr.mxu0 0.0
  %99 = vmatpush2.xpose.msra.mxu0 0.0
  %100 = vmatprep.subr.mxu0 0.0
  %101 = vmatpush2.xpose.msra.mxu0 0.0
  %102 = vmatprep.subr.mxu0 0.0
  %103 = vmatpush2.xpose.msra.mxu0 0.0
  %104 = vmatprep.subr.mxu0 0.0
  %105 = vmatpush2.xpose.msra.mxu0 0.0
  %106 = vmatprep.subr.mxu0 0.0
  %107 = vmatpush2.xpose.msra.mxu0 0.0
  %108 = vmatprep.mubr.f32.mxu0 0.0
  %109 = vmatmul.mubr.f32.gmra.mxu0 %v39
  %v110 = vpop.f32.mrf.mxu0
  %v111 = vadd.f32 0.0, %v110
  %v112 = vpop.f32.mrf.mxu0
  %113 = vdwg.mxu0
  %v114 = vld [vmem:[%s2] sm:$0xff]
  %v115 = vld [vmem:[%s2 + $0x8] sm:$0xff]
  %v116 = vld [vmem:[%s2 + $0x10] sm:$0xff]
  %v117 = vld [vmem:[%s2 + $0x18] sm:$0xff]
  %v118 = vld [vmem:[%s3] sm:$0xff]
  %v119 = vld [vmem:[%s3 + $0x8] sm:$0xff]
  %v120 = vld [vmem:[%s3 + $0x10] sm:$0xff]
  %v121 = vld [vmem:[%s3 + $0x18] sm:$0xff]
  %123 = vset.pattern.permute.xlu0 0
  %124 = vperm.xlu0 %123, %v118
  %v125 = vpop.permute.xlu0 %124
  %128 = vset.pattern.permute.xlu0 0
  %129 = vperm.xlu0 %128, %v119
  %v130 = vpop.permute.xlu0 %129
  %133 = vset.pattern.permute.xlu0 0
  %134 = vperm.xlu0 %133, %v120
  %v135 = vpop.permute.xlu0 %134
  %138 = vset.pattern.permute.xlu0 0
  %139 = vperm.xlu0 %138, %v121
  %v140 = vpop.permute.xlu0 %139
  %v143 = vsel %vm37, %v114, 0
  %v146 = vsel %vm37, %v115, 0
  %v149 = vsel %vm37, %v116, 0
  %v152 = vsel %vm37, %v117, 0
  %154 = vmatprep.subr.mxu0 0.0
  %155 = vmatpush1.xpose.msra.mxu0 0.0
  %156 = vmatprep.subr.mxu0 0.0
  %157 = vmatpush1.xpose.msra.mxu0 0.0
  %158 = vmatprep.subr.mxu0 0.0
  %159 = vmatpush1.xpose.msra.mxu0 0.0
  %160 = vmatprep.subr.mxu0 0.0
  %161 = vmatpush1.xpose.msra.mxu0 0.0
  %162 = vmatprep.subr.mxu0 0.0
  %163 = vmatpush1.xpose.msra.mxu0 0.0
  %164 = vmatprep.subr.mxu0 0.0
  %165 = vmatpush1.xpose.msra.mxu0 0.0
  %166 = vmatprep.subr.mxu0 0.0
  %167 = vmatpush1.xpose.msra.mxu0 0.0
  %168 = vmatprep.subr.mxu0 0.0
  %169 = vmatpush1.xpose.msra.mxu0 0.0
  %170 = vmatprep.subr.mxu0 0.0
  %171 = vmatpush1.xpose.msra.mxu0 0.0
  %172 = vmatprep.subr.mxu0 0.0
  %173 = vmatpush1.xpose.msra.mxu0 0.0
  %174 = vmatprep.subr.mxu0 0.0
  %175 = vmatpush1.xpose.msra.mxu0 0.0
  %176 = vmatprep.subr.mxu0 0.0
  %177 = vmatpush1.xpose.msra.mxu0 0.0
  %178 = vmatprep.subr.mxu0 0.0
  %179 = vmatpush1.xpose.msra.mxu0 0.0
  %180 = vmatprep.subr.mxu0 0.0
  %181 = vmatpush1.xpose.msra.mxu0 0.0
  %182 = vmatprep.subr.mxu0 0.0
  %183 = vmatpush1.xpose.msra.mxu0 0.0
  %184 = vmatprep.subr.mxu0 0.0
  %185 = vmatpush1.xpose.msra.mxu0 %v42
  %186 = vmatprep.subr.mxu0 0.0
  %187 = vmatpush2.xpose.msra.mxu0 0.0
  %188 = vmatprep.subr.mxu0 0.0
  %189 = vmatpush2.xpose.msra.mxu0 0.0
  %190 = vmatprep.subr.mxu0 0.0
  %191 = vmatpush2.xpose.msra.mxu0 0.0
  %192 = vmatprep.subr.mxu0 0.0
  %193 = vmatpush2.xpose.msra.mxu0 0.0
  %194 = vmatprep.subr.mxu0 0.0
  %195 = vmatpush2.xpose.msra.mxu0 0.0
  %196 = vmatprep.subr.mxu0 0.0
  %197 = vmatpush2.xpose.msra.mxu0 0.0
  %198 = vmatprep.subr.mxu0 0.0
  %199 = vmatpush2.xpose.msra.mxu0 0.0
  %200 = vmatprep.subr.mxu0 0.0
  %201 = vmatpush2.xpose.msra.mxu0 0.0
  %202 = vmatprep.subr.mxu0 0.0
  %203 = vmatpush2.xpose.msra.mxu0 0.0
  %204 = vmatprep.subr.mxu0 0.0
  %205 = vmatpush2.xpose.msra.mxu0 0.0
  %206 = vmatprep.subr.mxu0 0.0
  %207 = vmatpush2.xpose.msra.mxu0 0.0
  %208 = vmatprep.subr.mxu0 0.0
  %209 = vmatpush2.xpose.msra.mxu0 0.0
  %210 = vmatprep.subr.mxu0 0.0
  %211 = vmatpush2.xpose.msra.mxu0 0.0
  %212 = vmatprep.subr.mxu0 0.0
  %213 = vmatpush2.xpose.msra.mxu0 0.0
  %214 = vmatprep.subr.mxu0 0.0
  %215 = vmatpush2.xpose.msra.mxu0 0.0
  %216 = vmatprep.subr.mxu0 0.0
  %217 = vmatpush2.xpose.msra.mxu0 0.0
  %218 = vmatprep.mubr.f32.mxu0 0.0
  %219 = vmatmul.mubr.f32.gmra.mxu0 %v143
  %v220 = vpop.f32.mrf.mxu0
  %v221 = vadd.f32 %v125, %v220
  %v222 = vpop.f32.mrf.mxu0
  %223 = vmatprep.mubr.f32.mxu0 0.0
  %224 = vmatmul.mubr.f32.gmra.mxu0 %v146
  %v225 = vpop.f32.mrf.mxu0
  %v226 = vadd.f32 %v130, %v225
  %v227 = vpop.f32.mrf.mxu0
  %228 = vmatprep.mubr.f32.mxu0 0.0
  %229 = vmatmul.mubr.f32.gmra.mxu0 %v149
  %v230 = vpop.f32.mrf.mxu0
  %v231 = vadd.f32 %v135, %v230
  %v232 = vpop.f32.mrf.mxu0
  %233 = vmatprep.mubr.f32.mxu0 0.0
  %234 = vmatmul.mubr.f32.gmra.mxu0 %v152
  %v235 = vpop.f32.mrf.mxu0
  %v236 = vadd.f32 %v140, %v235
  %v237 = vpop.f32.mrf.mxu0
  %238 = vdwg.mxu0
  %v239 = vmax.f32 %v221, 0.0
  %v240 = vmax.f32 %v226, 0.0
  %v241 = vmax.f32 %v231, 0.0
  %v242 = vmax.f32 %v236, 0.0
  %v243 = vld [vmem:[%s4] sm:$0xff]
  %v244 = vld [vmem:[%s4 + $0x8] sm:$0xff]
  %v245 = vld [vmem:[%s4 + $0x10] sm:$0xff]
  %v246 = vld [vmem:[%s4 + $0x18] sm:$0xff]
  %v247 = vld [vmem:[%s5] sm:$0xff]
  %v248 = vld [vmem:[%s5 + $0x8] sm:$0xff]
  %v249 = vld [vmem:[%s5 + $0x10] sm:$0xff]
  %v250 = vld [vmem:[%s5 + $0x18] sm:$0xff]
  %252 = vset.pattern.permute.xlu0 0
  %253 = vperm.xlu0 %252, %v247
  %v254 = vpop.permute.xlu0 %253
  %257 = vset.pattern.permute.xlu0 0
  %258 = vperm.xlu0 %257, %v248
  %v259 = vpop.permute.xlu0 %258
  %262 = vset.pattern.permute.xlu0 0
  %263 = vperm.xlu0 %262, %v249
  %v264 = vpop.permute.xlu0 %263
  %267 = vset.pattern.permute.xlu0 0
  %268 = vperm.xlu0 %267, %v250
  %v269 = vpop.permute.xlu0 %268
  %vm271 = vcmask 261120
  %v273 = vsel %vm271, %v243, 0
  %v276 = vsel %vm271, %v244, 0
  %v279 = vsel %vm271, %v245, 0
  %v282 = vsel %vm271, %v246, 0
  %284 = vmatprep.subr.mxu0 0.0
  %285 = vmatpush1.msra.mxu0 0.0
  %286 = vmatprep.subr.mxu0 0.0
  %287 = vmatpush1.msra.mxu0 0.0
  %288 = vmatprep.subr.mxu0 0.0
  %289 = vmatpush1.msra.mxu0 0.0
  %290 = vmatprep.subr.mxu0 0.0
  %291 = vmatpush1.msra.mxu0 0.0
  %292 = vmatprep.subr.mxu0 0.0
  %293 = vmatpush1.msra.mxu0 0.0
  %294 = vmatprep.subr.mxu0 0.0
  %295 = vmatpush1.msra.mxu0 0.0
  %296 = vmatprep.subr.mxu0 0.0
  %297 = vmatpush1.msra.mxu0 0.0
  %298 = vmatprep.subr.mxu0 0.0
  %299 = vmatpush1.msra.mxu0 0.0
  %300 = vmatprep.subr.mxu0 0.0
  %301 = vmatpush1.msra.mxu0 0.0
  %302 = vmatprep.subr.mxu0 0.0
  %303 = vmatpush1.msra.mxu0 0.0
  %304 = vmatprep.subr.mxu0 0.0
  %305 = vmatpush1.msra.mxu0 0.0
  %306 = vmatprep.subr.mxu0 0.0
  %307 = vmatpush1.msra.mxu0 0.0
  %308 = vmatprep.subr.mxu0 0.0
  %309 = vmatpush1.msra.mxu0 %v242
  %310 = vmatprep.subr.mxu0 0.0
  %311 = vmatpush1.msra.mxu0 %v241
  %312 = vmatprep.subr.mxu0 0.0
  %313 = vmatpush1.msra.mxu0 %v240
  %314 = vmatprep.subr.mxu0 0.0
  %315 = vmatpush1.msra.mxu0 %v239
  %316 = vmatprep.subr.mxu0 0.0
  %317 = vmatpush2.msra.mxu0 0.0
  %318 = vmatprep.subr.mxu0 0.0
  %319 = vmatpush2.msra.mxu0 0.0
  %320 = vmatprep.subr.mxu0 0.0
  %321 = vmatpush2.msra.mxu0 0.0
  %322 = vmatprep.subr.mxu0 0.0
  %323 = vmatpush2.msra.mxu0 0.0
  %324 = vmatprep.subr.mxu0 0.0
  %325 = vmatpush2.msra.mxu0 0.0
  %326 = vmatprep.subr.mxu0 0.0
  %327 = vmatpush2.msra.mxu0 0.0
  %328 = vmatprep.subr.mxu0 0.0
  %329 = vmatpush2.msra.mxu0 0.0
  %330 = vmatprep.subr.mxu0 0.0
  %331 = vmatpush2.msra.mxu0 0.0
  %332 = vmatprep.subr.mxu0 0.0
  %333 = vmatpush2.msra.mxu0 0.0
  %334 = vmatprep.subr.mxu0 0.0
  %335 = vmatpush2.msra.mxu0 0.0
  %336 = vmatprep.subr.mxu0 0.0
  %337 = vmatpush2.msra.mxu0 0.0
  %338 = vmatprep.subr.mxu0 0.0
  %339 = vmatpush2.msra.mxu0 0.0
  %340 = vmatprep.subr.mxu0 0.0
  %341 = vmatpush2.msra.mxu0 0.0
  %342 = vmatprep.subr.mxu0 0.0
  %343 = vmatpush2.msra.mxu0 0.0
  %344 = vmatprep.subr.mxu0 0.0
  %345 = vmatpush2.msra.mxu0 0.0
  %346 = vmatprep.subr.mxu0 0.0
  %347 = vmatpush2.msra.mxu0 0.0
  %348 = vmatprep.mubr.f32.mxu0 0.0
  %349 = vmatmul.mubr.f32.gmra.mxu0 %v273
  %v350 = vpop.f32.mrf.mxu0
  %v351 = vadd.f32 %v254, %v350
  %v352 = vpop.f32.mrf.mxu0
  %353 = vmatprep.mubr.f32.mxu0 0.0
  %354 = vmatmul.mubr.f32.gmra.mxu0 %v276
  %v355 = vpop.f32.mrf.mxu0
  %v356 = vadd.f32 %v259, %v355
  %v357 = vpop.f32.mrf.mxu0
  %358 = vmatprep.mubr.f32.mxu0 0.0
  %359 = vmatmul.mubr.f32.gmra.mxu0 %v279
  %v360 = vpop.f32.mrf.mxu0
  %v361 = vadd.f32 %v264, %v360
  %v362 = vpop.f32.mrf.mxu0
  %363 = vmatprep.mubr.f32.mxu0 0.0
  %364 = vmatmul.mubr.f32.gmra.mxu0 %v282
  %v365 = vpop.f32.mrf.mxu0
  %v366 = vadd.f32 %v269, %v365
  %v367 = vpop.f32.mrf.mxu0
  %368 = vdwg.mxu0
  %v369 = vmax.f32 %v351, 0.0
  %v370 = vmax.f32 %v356, 0.0
  %v371 = vmax.f32 %v361, 0.0
  %v372 = vmax.f32 %v366, 0.0
  %v373 = vld [vmem:[%s6] sm:$0xff]
  %v374 = vld [vmem:[%s6 + $0x8] sm:$0xff]
  %v375 = vld [vmem:[%s6 + $0x10] sm:$0xff]
  %v376 = vld [vmem:[%s6 + $0x18] sm:$0xff]
  %v377 = vld [vmem:[%s7] sm:$0xff]
  %v378 = vld [vmem:[%s7 + $0x8] sm:$0xff]
  %v379 = vld [vmem:[%s7 + $0x10] sm:$0xff]
  %v380 = vld [vmem:[%s7 + $0x18] sm:$0xff]
  %382 = vset.pattern.permute.xlu0 0
  %383 = vperm.xlu0 %382, %v377
  %v384 = vpop.permute.xlu0 %383
  %387 = vset.pattern.permute.xlu0 0
  %388 = vperm.xlu0 %387, %v378
  %v389 = vpop.permute.xlu0 %388
  %392 = vset.pattern.permute.xlu0 0
  %393 = vperm.xlu0 %392, %v379
  %v394 = vpop.permute.xlu0 %393
  %397 = vset.pattern.permute.xlu0 0
  %398 = vperm.xlu0 %397, %v380
  %v399 = vpop.permute.xlu0 %398
  %v402 = vsel %vm271, %v373, 0
  %v405 = vsel %vm271, %v374, 0
  %v408 = vsel %vm271, %v375, 0
  %v411 = vsel %vm271, %v376, 0
  %413 = vmatprep.subr.mxu0 0.0
  %414 = vmatpush1.msra.mxu0 0.0
  %415 = vmatprep.subr.mxu0 0.0
  %416 = vmatpush1.msra.mxu0 0.0
  %417 = vmatprep.subr.mxu0 0.0
  %418 = vmatpush1.msra.mxu0 0.0
  %419 = vmatprep.subr.mxu0 0.0
  %420 = vmatpush1.msra.mxu0 0.0
  %421 = vmatprep.subr.mxu0 0.0
  %422 = vmatpush1.msra.mxu0 0.0
  %423 = vmatprep.subr.mxu0 0.0
  %424 = vmatpush1.msra.mxu0 0.0
  %425 = vmatprep.subr.mxu0 0.0
  %426 = vmatpush1.msra.mxu0 0.0
  %427 = vmatprep.subr.mxu0 0.0
  %428 = vmatpush1.msra.mxu0 0.0
  %429 = vmatprep.subr.mxu0 0.0
  %430 = vmatpush1.msra.mxu0 0.0
  %431 = vmatprep.subr.mxu0 0.0
  %432 = vmatpush1.msra.mxu0 0.0
  %433 = vmatprep.subr.mxu0 0.0
  %434 = vmatpush1.msra.mxu0 0.0
  %435 = vmatprep.subr.mxu0 0.0
  %436 = vmatpush1.msra.mxu0 0.0
  %437 = vmatprep.subr.mxu0 0.0
  %438 = vmatpush1.msra.mxu0 %v372
  %439 = vmatprep.subr.mxu0 0.0
  %440 = vmatpush1.msra.mxu0 %v371
  %441 = vmatprep.subr.mxu0 0.0
  %442 = vmatpush1.msra.mxu0 %v370
  %443 = vmatprep.subr.mxu0 0.0
  %444 = vmatpush1.msra.mxu0 %v369
  %445 = vmatprep.subr.mxu0 0.0
  %446 = vmatpush2.msra.mxu0 0.0
  %447 = vmatprep.subr.mxu0 0.0
  %448 = vmatpush2.msra.mxu0 0.0
  %449 = vmatprep.subr.mxu0 0.0
  %450 = vmatpush2.msra.mxu0 0.0
  %451 = vmatprep.subr.mxu0 0.0
  %452 = vmatpush2.msra.mxu0 0.0
  %453 = vmatprep.subr.mxu0 0.0
  %454 = vmatpush2.msra.mxu0 0.0
  %455 = vmatprep.subr.mxu0 0.0
  %456 = vmatpush2.msra.mxu0 0.0
  %457 = vmatprep.subr.mxu0 0.0
  %458 = vmatpush2.msra.mxu0 0.0
  %459 = vmatprep.subr.mxu0 0.0
  %460 = vmatpush2.msra.mxu0 0.0
  %461 = vmatprep.subr.mxu0 0.0
  %462 = vmatpush2.msra.mxu0 0.0
  %463 = vmatprep.subr.mxu0 0.0
  %464 = vmatpush2.msra.mxu0 0.0
  %465 = vmatprep.subr.mxu0 0.0
  %466 = vmatpush2.msra.mxu0 0.0
  %467 = vmatprep.subr.mxu0 0.0
  %468 = vmatpush2.msra.mxu0 0.0
  %469 = vmatprep.subr.mxu0 0.0
  %470 = vmatpush2.msra.mxu0 0.0
  %471 = vmatprep.subr.mxu0 0.0
  %472 = vmatpush2.msra.mxu0 0.0
  %473 = vmatprep.subr.mxu0 0.0
  %474 = vmatpush2.msra.mxu0 0.0
  %475 = vmatprep.subr.mxu0 0.0
  %476 = vmatpush2.msra.mxu0 0.0
  %477 = vmatprep.mubr.f32.mxu0 0.0
  %478 = vmatmul.mubr.f32.gmra.mxu0 %v402
  %v479 = vpop.f32.mrf.mxu0
  %v480 = vadd.f32 %v384, %v479
  %v481 = vpop.f32.mrf.mxu0
  %482 = vmatprep.mubr.f32.mxu0 0.0
  %483 = vmatmul.mubr.f32.gmra.mxu0 %v405
  %v484 = vpop.f32.mrf.mxu0
  %v485 = vadd.f32 %v389, %v484
  %v486 = vpop.f32.mrf.mxu0
  %487 = vmatprep.mubr.f32.mxu0 0.0
  %488 = vmatmul.mubr.f32.gmra.mxu0 %v408
  %v489 = vpop.f32.mrf.mxu0
  %v490 = vadd.f32 %v394, %v489
  %v491 = vpop.f32.mrf.mxu0
  %492 = vmatprep.mubr.f32.mxu0 0.0
  %493 = vmatmul.mubr.f32.gmra.mxu0 %v411
  %v494 = vpop.f32.mrf.mxu0
  %v495 = vadd.f32 %v399, %v494
  %v496 = vpop.f32.mrf.mxu0
  %497 = vdwg.mxu0
  %v498 = vmax.f32 %v480, 0.0
  %v499 = vmax.f32 %v485, 0.0
  %v500 = vmax.f32 %v490, 0.0
  %v501 = vmax.f32 %v495, 0.0
  %v502 = vld [vmem:[%s8] sm:$0xff]
  %v503 = vld [vmem:[%s9] sm:$0xff]
  %505 = vset.pattern.permute.xlu0 0
  %506 = vperm.xlu0 %505, %v503
  %v507 = vpop.permute.xlu0 %506
  %v510 = vsel %vm271, %v502, 0
  %512 = vmatprep.subr.mxu0 0.0
  %513 = vmatpush1.msra.mxu0 0.0
  %514 = vmatprep.subr.mxu0 0.0
  %515 = vmatpush1.msra.mxu0 0.0
  %516 = vmatprep.subr.mxu0 0.0
  %517 = vmatpush1.msra.mxu0 0.0
  %518 = vmatprep.subr.mxu0 0.0
  %519 = vmatpush1.msra.mxu0 0.0
  %520 = vmatprep.subr.mxu0 0.0
  %521 = vmatpush1.msra.mxu0 0.0
  %522 = vmatprep.subr.mxu0 0.0
  %523 = vmatpush1.msra.mxu0 0.0
  %524 = vmatprep.subr.mxu0 0.0
  %525 = vmatpush1.msra.mxu0 0.0
  %526 = vmatprep.subr.mxu0 0.0
  %527 = vmatpush1.msra.mxu0 0.0
  %528 = vmatprep.subr.mxu0 0.0
  %529 = vmatpush1.msra.mxu0 0.0
  %530 = vmatprep.subr.mxu0 0.0
  %531 = vmatpush1.msra.mxu0 0.0
  %532 = vmatprep.subr.mxu0 0.0
  %533 = vmatpush1.msra.mxu0 0.0
  %534 = vmatprep.subr.mxu0 0.0
  %535 = vmatpush1.msra.mxu0 0.0
  %536 = vmatprep.subr.mxu0 0.0
  %537 = vmatpush1.msra.mxu0 %v501
  %538 = vmatprep.subr.mxu0 0.0
  %539 = vmatpush1.msra.mxu0 %v500
  %540 = vmatprep.subr.mxu0 0.0
  %541 = vmatpush1.msra.mxu0 %v499
  %542 = vmatprep.subr.mxu0 0.0
  %543 = vmatpush1.msra.mxu0 %v498
  %544 = vmatprep.subr.mxu0 0.0
  %545 = vmatpush2.msra.mxu0 0.0
  %546 = vmatprep.subr.mxu0 0.0
  %547 = vmatpush2.msra.mxu0 0.0
  %548 = vmatprep.subr.mxu0 0.0
  %549 = vmatpush2.msra.mxu0 0.0
  %550 = vmatprep.subr.mxu0 0.0
  %551 = vmatpush2.msra.mxu0 0.0
  %552 = vmatprep.subr.mxu0 0.0
  %553 = vmatpush2.msra.mxu0 0.0
  %554 = vmatprep.subr.mxu0 0.0
  %555 = vmatpush2.msra.mxu0 0.0
  %556 = vmatprep.subr.mxu0 0.0
  %557 = vmatpush2.msra.mxu0 0.0
  %558 = vmatprep.subr.mxu0 0.0
  %559 = vmatpush2.msra.mxu0 0.0
  %560 = vmatprep.subr.mxu0 0.0
  %561 = vmatpush2.msra.mxu0 0.0
  %562 = vmatprep.subr.mxu0 0.0
  %563 = vmatpush2.msra.mxu0 0.0
  %564 = vmatprep.subr.mxu0 0.0
  %565 = vmatpush2.msra.mxu0 0.0
  %566 = vmatprep.subr.mxu0 0.0
  %567 = vmatpush2.msra.mxu0 0.0
  %568 = vmatprep.subr.mxu0 0.0
  %569 = vmatpush2.msra.mxu0 0.0
  %570 = vmatprep.subr.mxu0 0.0
  %571 = vmatpush2.msra.mxu0 0.0
  %572 = vmatprep.subr.mxu0 0.0
  %573 = vmatpush2.msra.mxu0 0.0
  %574 = vmatprep.subr.mxu0 0.0
  %575 = vmatpush2.msra.mxu0 0.0
  %576 = vmatprep.mubr.f32.mxu0 0.0
  %577 = vmatmul.mubr.f32.gmra.mxu0 %v510
  %v578 = vpop.f32.mrf.mxu0
  %v579 = vadd.f32 %v507, %v578
  %v580 = vpop.f32.mrf.mxu0
  %581 = vdwg.mxu0
  %v583 = vrot.slane %v579, 4
  %vm585 = vcmask 1043456
  %v586 = vsel %vm585, %v111, %v583
  %vm587 = vcmask 64512
  %588 = vst.msk [vmem:[%s10] sm:$0xff] %vm587, %v586
  %vm589 = vcmask 60416
  %590 = vst.msk [vmem:[%s10 + $0x8] sm:$0xf] %vm589, %v583
  // Predicated region
  $region42: #{tpu_custom_call.1} parent=0 // pred_check
    _
  $region43: #{tpu_custom_call.1} parent=0 // pred_check_branch
    %592 = sbr.rel (0) target = $region45
  $region44: #{tpu_custom_call.1} parent=0 // pred_region
    _
  $region45: #{tpu_custom_call.1} parent=0 // pred_fallthru
    _
  // Predicated region
  $region46: #{tpu_custom_call.1} parent=0 // pred_check
    _
  $region47: #{tpu_custom_call.1} parent=0 // pred_check_branch
    %594 = sbr.rel (0) target = $region49
  $region48: #{tpu_custom_call.1} parent=0 // pred_region
    _
  $region49: #{tpu_custom_call.1} parent=0 // pred_fallthru
    _

</llo_original>
